<compile_context>
chip_gen: v7x
topology: tpu7x:2x2x1
jax: 0.10.0
libtpu: 0.0.40
codegen_flags: <defaults>
</compile_context>

<pallas_src>
import functools

import jax
import jax.numpy as jnp
import numpy as np
from jax.experimental import pallas as pl
from jax.experimental.pallas import tpu as pltpu

LN_EPS = 1e-5  # torch.nn.LayerNorm default


def _merge_kernel(x_ref, w_ref, cs_ref, b_ref, o_ref):
    """Fused LayerNorm(4C) + Linear(4C -> CO, no bias) over a row tile.

    x_ref:  (TN, 4C)  merged-patch rows, channels in "natural" gather order,
                      already cast to the matmul dtype (bf16 by default)
    w_ref:  (4C, CO)  folded weight: rows permuted to natural order and
                      pre-scaled by the LayerNorm gamma
    cs_ref: (1, CO)   column sums of the folded weight  (== weight @ gamma)
    b_ref:  (1, CO)   folded LayerNorm bias             (== weight @ beta)
    o_ref:  (TN, CO)
    """
    x = x_ref[...]
    x32 = x.astype(jnp.float32)

    # Single-pass statistics (sum / sum-of-squares), f32.
    inv_n = 1.0 / x.shape[-1]                       # 1 / (4C), static
    s = jnp.sum(x32, axis=-1, keepdims=True)
    ss = jnp.sum(x32 * x32, axis=-1, keepdims=True)
    mean = s * inv_n                                # (TN, 1)
    var = ss * inv_n - mean * mean
    rstd = jax.lax.rsqrt(var + LN_EPS)              # (TN, 1)

    # MXU matmul in the (bf16) storage dtype, accumulating in f32.
    acc = jnp.dot(x, w_ref[...], preferred_element_type=jnp.float32)  # (TN, CO)

    colsum = cs_ref[...].astype(jnp.float32)        # (1, CO)
    bias = b_ref[...].astype(jnp.float32)           # (1, CO)
    y = rstd * (acc - mean * colsum) + bias
    o_ref[...] = y.astype(o_ref.dtype)


def _round_up(v, m):
    return -(-v // m) * m


def _pick_tile_rows(n_rows, c4, c_out, in_itemsize, out_itemsize,
                    vmem_budget_bytes=12 * 1024 * 1024):
    """Rows per grid step, sized against a conservative VMEM budget
    (double-buffered I/O + f32 temporaries) so a single step moves enough
    bytes to amortize the ~0.35us per-step overhead, while staying well under
    the scoped-VMEM limit on every generation (incl. v7x's 64 MiB VMEM)."""
    c4p = _round_up(c4, 128)
    cop = _round_up(c_out, 128)
    per_row = (2 * c4p * in_itemsize      # input block, double-buffered
               + 2 * cop * out_itemsize   # output block, double-buffered
               + 3 * c4p * 4              # f32 temporaries (cast, squares)
               + 3 * cop * 4)             # f32 accumulator / epilogue temps
    fixed = 2 * c4p * cop * in_itemsize + 4 * cop * 4   # weight + vectors
    tile = max(8, (vmem_budget_bytes - fixed) // per_row)
    tile = min(tile, max(8, n_rows))
    return int(max(8, (tile // 8) * 8))   # keep sublane-aligned


def patch_merging3d(x, gamma, beta, weight, *,
                    matmul_dtype=jnp.bfloat16, tile_rows=None):
    """Forward of PatchMerging3D.

    x:      (B, D, H, W, C)
    gamma:  (4C,)    LayerNorm weight
    beta:   (4C,)    LayerNorm bias
    weight: (2C, 4C) nn.Linear weight (y = x @ weight.T, no bias)
    returns (B, D, ceil(H/2), ceil(W/2), 2C), dtype of x.
    tile_rows, if given, should be a multiple of 8.
    """
    b, d, h, w, c = x.shape
    out_dtype = x.dtype
    c4 = 4 * c
    c_out = weight.shape[0]

    # Same as F.pad(x, (0, 0, 0, w % 2, 0, h % 2)); required by semantics.
    if (h % 2 == 1) or (w % 2 == 1):
        x = jnp.pad(x, ((0, 0), (0, 0), (0, h % 2), (0, w % 2), (0, 0)))
    hp, wp = x.shape[2], x.shape[3]
    ho, wo = hp // 2, wp // 2
    n_rows = b * d * ho * wo

    # One fused gather copy: (B,D,2ho,2wo,C) -> (N, 4C) rows whose channels are
    # in "natural" order [h0w0 | h0w1 | h1w0 | h1w1]; also casts to the matmul
    # dtype so the intermediate is half-width when bf16 is used.
    xg = x.reshape(b, d, ho, 2, wo, 2, c)
    xg = jnp.transpose(xg, (0, 1, 2, 4, 3, 5, 6))
    xg = xg.reshape(n_rows, c4).astype(matmul_dtype)

    # Fold the LayerNorm affine and the torch concat order into the weight.
    #   torch order:   [h0w0, h1w0, h0w1, h1w1]   (w-parity major)
    #   natural order: [h0w0, h0w1, h1w0, h1w1]   (h-parity major)
    n2m = np.concatenate([np.arange(c), 2 * c + np.arange(c),
                          c + np.arange(c), 3 * c + np.arange(c)])
    w_fold = (weight * gamma[None, :])[:, n2m].T.astype(matmul_dtype)  # (4C, CO)
    colsum = (weight @ gamma).reshape(1, c_out).astype(jnp.float32)    # (1, CO)
    bias = (weight @ beta).reshape(1, c_out).astype(jnp.float32)       # (1, CO)

    in_itemsize = jnp.dtype(matmul_dtype).itemsize
    out_itemsize = jnp.dtype(out_dtype).itemsize
    if tile_rows is None:
        tile_rows = _pick_tile_rows(n_rows, c4, c_out, in_itemsize, out_itemsize)
    tile_rows = int(tile_rows)

    grid = (pl.cdiv(n_rows, tile_rows),)
    cost = pl.CostEstimate(
        flops=2 * n_rows * c4 * c_out,
        transcendentals=n_rows,
        bytes_accessed=(n_rows * (c4 * in_itemsize + c_out * out_itemsize)
                        + c4 * c_out * in_itemsize + 2 * c_out * 4),
    )

    out = pl.pallas_call(
        _merge_kernel,
        out_shape=jax.ShapeDtypeStruct((n_rows, c_out), out_dtype),
        grid=grid,
        in_specs=[
            pl.BlockSpec((tile_rows, c4), lambda i: (i, 0)),
            pl.BlockSpec((c4, c_out), lambda i: (0, 0)),
            pl.BlockSpec((1, c_out), lambda i: (0, 0)),
            pl.BlockSpec((1, c_out), lambda i: (0, 0)),
        ],
        out_specs=pl.BlockSpec((tile_rows, c_out), lambda i: (i, 0)),
        compiler_params=pltpu.CompilerParams(
            dimension_semantics=("parallel",),
            vmem_limit_bytes=32 * 1024 * 1024,
        ),
        cost_estimate=cost,
    )(xg, w_fold, colsum, bias)

    return out.reshape(b, d, ho, wo, c_out)


def _reference(x, gamma, beta, weight):
    """Pure-JAX reference (mirrors the PyTorch module) for correctness check."""
    b, d, h, w, c = x.shape
    if (h % 2 == 1) or (w % 2 == 1):
        x = jnp.pad(x, ((0, 0), (0, 0), (0, h % 2), (0, w % 2), (0, 0)))
    x0 = x[:, :, 0::2, 0::2, :]
    x1 = x[:, :, 1::2, 0::2, :]
    x2 = x[:, :, 0::2, 1::2, :]
    x3 = x[:, :, 1::2, 1::2, :]
    xc = jnp.concatenate([x0, x1, x2, x3], axis=-1).astype(jnp.float32)
    mean = jnp.mean(xc, axis=-1, keepdims=True)
    var = jnp.mean((xc - mean) ** 2, axis=-1, keepdims=True)
    xn = (xc - mean) * jax.lax.rsqrt(var + LN_EPS)
    xn = xn * gamma + beta
    return jnp.einsum("...i,oi->...o", xn, weight)


if __name__ == "__main__":
    key = jax.random.PRNGKey(0)

    def _make(shape, kk):
        bb, dd, hh, ww, cc = shape
        kx, kg, kb, kw = jax.random.split(kk, 4)
        x = jax.random.normal(kx, (bb, dd, hh, ww, cc), dtype=jnp.float32)
        gamma = 1.0 + 0.01 * jax.random.normal(kg, (4 * cc,), dtype=jnp.float32)
        beta = 0.01 * jax.random.normal(kb, (4 * cc,), dtype=jnp.float32)
        weight = jax.random.normal(kw, (2 * cc, 4 * cc), dtype=jnp.float32) / jnp.sqrt(4.0 * cc)
        return x, gamma, beta, weight

    k1, k2 = jax.random.split(key)

    # Case 1: odd H exercises the padding branch; small C (dim=32).
    x, gamma, beta, weight = _make((2, 2, 9, 8, 32), k1)
    ref = _reference(x, gamma, beta, weight)

    # (a) f32 matmul path, forced small tile -> multi-step ragged grid.
    f32_fwd = jax.jit(functools.partial(patch_merging3d,
                                        matmul_dtype=jnp.float32, tile_rows=32))
    out = jax.block_until_ready(f32_fwd(x, gamma, beta, weight))
    assert out.shape == (2, 2, 5, 4, 64), out.shape
    assert jnp.allclose(out, ref, atol=1e-3, rtol=1e-3), "f32 path mismatch"

    # (b) default path: bf16 MXU matmul, auto-sized row tile.
    bf16_fwd = jax.jit(patch_merging3d)
    out = jax.block_until_ready(bf16_fwd(x, gamma, beta, weight))
    assert out.shape == (2, 2, 5, 4, 64), out.shape
    assert jnp.allclose(out, ref, atol=3e-2, rtol=3e-2), "bf16 path mismatch"

    # Case 2: even H/W, larger C (lane-dense 4C=256, CO=128).
    x, gamma, beta, weight = _make((1, 2, 8, 12, 64), k2)
    ref = _reference(x, gamma, beta, weight)
    out = jax.block_until_ready(jax.jit(patch_merging3d)(x, gamma, beta, weight))
    assert out.shape == (1, 2, 4, 6, 128), out.shape
    assert jnp.allclose(out, ref, atol=3e-2, rtol=3e-2), "case-2 mismatch"

    print("KERNEL_OK")
</pallas_src>

<mosaic_0001>
module attributes {stable_mosaic.version = 11 : i64} {
  func.func @_merge_kernel(%arg0: i32, %arg1: memref<32x128xf32, #tpu.memory_space<vmem>>, %arg2: memref<128x64xf32, #tpu.memory_space<vmem>>, %arg3: memref<1x64xf32, #tpu.memory_space<vmem>>, %arg4: memref<1x64xf32, #tpu.memory_space<vmem>>, %arg5: memref<32x64xf32, #tpu.memory_space<vmem>>) attributes {dimension_semantics = [#tpu.dimension_semantics<parallel>], iteration_bounds = array<i64: 3>, scalar_prefetch = 0 : i64, scratch_operands = 0 : i64, tpu.core_type = #tpu.core_type<tc>, window_params = [{transform_indices = @transform_0, window_bounds = array<i64: 32, 128>}, {pipeline_mode = #tpu.pipeline_mode<synchronous>, transform_indices = @transform_1, window_bounds = array<i64: 128, 64>}, {pipeline_mode = #tpu.pipeline_mode<synchronous>, transform_indices = @transform_2, window_bounds = array<i64: 1, 64>}, {pipeline_mode = #tpu.pipeline_mode<synchronous>, transform_indices = @transform_3, window_bounds = array<i64: 1, 64>}, {transform_indices = @transform_4, window_bounds = array<i64: 32, 64>}]} {
    %c0 = arith.constant 0 : index
    %c0_0 = arith.constant 0 : index
    %0 = vector.load %arg1[%c0, %c0_0] : memref<32x128xf32, #tpu.memory_space<vmem>>, vector<32x128xf32>
    %cst = arith.constant dense<0.000000e+00> : vector<32xf32>
    %1 = vector.multi_reduction <add>, %0, %cst [1] : vector<32x128xf32> to vector<32xf32>
    %2 = vector.shape_cast %1 : vector<32xf32> to vector<32x1xf32>
    %3 = arith.mulf %0, %0 : vector<32x128xf32>
    %cst_1 = arith.constant dense<0.000000e+00> : vector<32xf32>
    %4 = vector.multi_reduction <add>, %3, %cst_1 [1] : vector<32x128xf32> to vector<32xf32>
    %5 = vector.shape_cast %4 : vector<32xf32> to vector<32x1xf32>
    %cst_2 = arith.constant 7.812500e-03 : f32
    %6 = vector.broadcast %cst_2 : f32 to vector<32x1xf32>
    %7 = arith.mulf %2, %6 : vector<32x1xf32>
    %cst_3 = arith.constant 7.812500e-03 : f32
    %8 = vector.broadcast %cst_3 : f32 to vector<32x1xf32>
    %9 = arith.mulf %5, %8 : vector<32x1xf32>
    %10 = arith.mulf %7, %7 : vector<32x1xf32>
    %11 = arith.subf %9, %10 : vector<32x1xf32>
    %cst_4 = arith.constant 9.99999974E-6 : f32
    %12 = vector.broadcast %cst_4 : f32 to vector<32x1xf32>
    %13 = arith.addf %11, %12 : vector<32x1xf32>
    %14 = math.rsqrt %13 : vector<32x1xf32>
    %c0_5 = arith.constant 0 : index
    %c0_6 = arith.constant 0 : index
    %15 = vector.load %arg2[%c0_5, %c0_6] : memref<128x64xf32, #tpu.memory_space<vmem>>, vector<128x64xf32>
    %cst_7 = arith.constant dense<0.000000e+00> : vector<32x64xf32>
    %16 = tpu.matmul %0, %15, %cst_7 {dimension_numbers = #tpu.dot_dimension_numbers<[1], [0], [0], [1], [0, 0, 1, 1], [], []>} : vector<32x128xf32>, vector<128x64xf32>, vector<32x64xf32> -> vector<32x64xf32>
    %c0_8 = arith.constant 0 : index
    %c0_9 = arith.constant 0 : index
    %17 = vector.load %arg3[%c0_8, %c0_9] : memref<1x64xf32, #tpu.memory_space<vmem>>, vector<1x64xf32>
    %c0_10 = arith.constant 0 : index
    %c0_11 = arith.constant 0 : index
    %18 = vector.load %arg4[%c0_10, %c0_11] : memref<1x64xf32, #tpu.memory_space<vmem>>, vector<1x64xf32>
    %19 = vector.broadcast %7 : vector<32x1xf32> to vector<32x64xf32>
    %20 = vector.broadcast %17 : vector<1x64xf32> to vector<32x64xf32>
    %21 = arith.mulf %19, %20 : vector<32x64xf32>
    %22 = arith.subf %16, %21 : vector<32x64xf32>
    %23 = vector.broadcast %14 : vector<32x1xf32> to vector<32x64xf32>
    %24 = arith.mulf %23, %22 : vector<32x64xf32>
    %25 = vector.broadcast %18 : vector<1x64xf32> to vector<32x64xf32>
    %26 = arith.addf %24, %25 : vector<32x64xf32>
    %c0_12 = arith.constant 0 : index
    %c0_13 = arith.constant 0 : index
    %27 = vector.load %arg5[%c0_12, %c0_13] : memref<32x64xf32, #tpu.memory_space<vmem>>, vector<32x64xf32>
    tpu.vector_store %arg5[%c0_12, %c0_13], %26 {strides = array<i32>} : memref<32x64xf32, #tpu.memory_space<vmem>>, vector<32x64xf32>,
    return
  }
  func.func @transform_0(%arg0: i32) -> (i32, i32) {
    %c0_i32 = arith.constant 0 : i32
    %c0_i32_0 = arith.constant 0 : i32
    return %arg0, %c0_i32 : i32, i32
  }
  func.func @transform_1(%arg0: i32) -> (i32, i32) {
    %c0_i32 = arith.constant 0 : i32
    %c0_i32_0 = arith.constant 0 : i32
    %c0_i32_1 = arith.constant 0 : i32
    return %c0_i32, %c0_i32_0 : i32, i32
  }
  func.func @transform_2(%arg0: i32) -> (i32, i32) {
    %c0_i32 = arith.constant 0 : i32
    %c0_i32_0 = arith.constant 0 : i32
    %c0_i32_1 = arith.constant 0 : i32
    return %c0_i32, %c0_i32_0 : i32, i32
  }
  func.func @transform_3(%arg0: i32) -> (i32, i32) {
    %c0_i32 = arith.constant 0 : i32
    %c0_i32_0 = arith.constant 0 : i32
    %c0_i32_1 = arith.constant 0 : i32
    return %c0_i32, %c0_i32_0 : i32, i32
  }
  func.func @transform_4(%arg0: i32) -> (i32, i32) {
    %c0_i32 = arith.constant 0 : i32
    %c0_i32_0 = arith.constant 0 : i32
    return %arg0, %c0_i32 : i32, i32
  }
}

</mosaic_0001>

<llo_original>
// kernel: patch_merging3d.1
$region0: #{patch_merging3d.1}
  #allocation0 [shape = 'u32[]', space=smem, size = 0x4, offset = 0x4, fixed_abs, tag = 'smem constant byte address 0x4 - core index']
  #allocation1 [shape = 'u32[144,128]{1,0:T(1,128)}', space=vmem, size = 0x12000, scoped, tag = 'internal scratch']
  %s0 = inlined_call_operand.vmem [shape: f32[80,128], index: 0, kind: input, shape index: {}]
  %s1 = inlined_call_operand.vmem [shape: f32[128,64], index: 1, kind: input, shape index: {}]
  %s2 = inlined_call_operand.vmem [shape: f32[1,64], index: 2, kind: input, shape index: {}]
  %s3 = inlined_call_operand.vmem [shape: f32[1,64], index: 3, kind: input, shape index: {}]
  %s4 = inlined_call_operand.hbm [shape: f32[80,64], index: 4, kind: output, shape index: {}]
  %s5 = sld [smem:[#allocation0]]
  $region49: #{patch_merging3d.1} parent=0
    _
  %s7 = ssub.s32 1, %s5
  %s8 = scalar_select 0, %s7, %s5
  $region1: #{patch_merging3d.1} parent=0
    #allocation2 [shape = 'u8[32768]{0}', space=vmem, size = 0x8000, scoped, tag = 'output window, operand 0']
    #allocation3 [shape = 's32[2]{0}', space=sflag, size = 0x8, scoped, tag = 'scoped memory for patch_merging3d.1']
    %9 = vsyncpa [#allocation3], 0
    %s10 = scalar_lea.sflag [#allocation3], 1
    %11 = vsyncpa %s10, 0
    loop: start=0, step=1, limit=5
    $region2: #{patch_merging3d.1} parent=1 // loop_pre_header
      _
    $region3: #{patch_merging3d.1} parent=1 // loop_header
      %s13 = sphi 0, %s17
      %p14 = scmp.ge.s32.totalorder %s13, 5
      %s23 = sphi 0, %s25
      %s26 = sphi 0, %s23
      %s27 = sphi 0, %s26
      %s43 = sphi 0, %s27
      %s47 = sphi 0, %s47
      %s49 = sphi 0, %s47
      %s50 = sphi 0, %s49
      %s64 = sphi 0, %s50
      %s68 = sphi 0, %s68
      %s70 = sphi 0, %s68
      %s71 = sphi 0, %s70
      %s85 = sphi 0, %s71
      %s89 = sphi 0, %s89
      %s91 = sphi 0, %s89
      %s92 = sphi 0, %s91
      %s106 = sphi 0, %s92
      %s112 = sphi 0, %s114
      %s115 = sphi 0, %s112
      %s116 = sphi 0, %s115
      %s132 = sphi 0, %s116
    $region4: #{patch_merging3d.1} parent=1 // loop_header_branch
      %16 = sbr.rel (%p14) target = $region8
    $region5: #{patch_merging3d.1} parent=1 // loop_body
      %s18 = ssub.s32 %s13, 1
      %s19 = ssub.s32 %s13, 2
      %s20 = sadd.s32 %s13, 1
      %s21 = ssub.s32 %s13, %s20
      %p22 = scmp.eq.s32.totalorder %s21, 0
      %s24 = sadd.s32 %s23, 1
      %s25 = scalar_select %p22, %s23, %s24
      %p28 = pneg %p22
      %p29 = scmp.eq.s32.totalorder %s13, 2
      %p30 = por %p28, %p29
      %p31 = scmp.ne.s32.totalorder %s23, %s26
      %p32 = scmp.eq.s32.totalorder %s13, 0
      %p33 = por %p31, %p32
      %p34 = scmp.ne.s32.totalorder %s23, %s26
      %p35 = scmp.eq.s32.totalorder %s18, 2
      %p36 = por %p34, %p35
      %p37 = scmp.ne.s32.totalorder %s26, %s27
      %p38 = scmp.eq.s32.totalorder %s18, 0
      %p39 = por %p37, %p38
      %p40 = scmp.ne.s32.totalorder %s26, %s27
      %p41 = scmp.eq.s32.totalorder %s19, 2
      %p42 = por %p40, %p41
      %p44 = scmp.ne.s32.totalorder %s27, %s43
      %p45 = scmp.eq.s32.totalorder %s19, 0
      %p46 = por %p44, %p45
      %s48 = sadd.s32 %s47, 1
      %p51 = scmp.eq.s32.totalorder %s13, 2
      %p52 = scmp.ne.s32.totalorder %s47, %s49
      %p53 = scmp.eq.s32.totalorder %s13, 0
      %p54 = por %p52, %p53
      %p55 = scmp.ne.s32.totalorder %s47, %s49
      %p56 = scmp.eq.s32.totalorder %s18, 2
      %p57 = por %p55, %p56
      %p58 = scmp.ne.s32.totalorder %s49, %s50
      %p59 = scmp.eq.s32.totalorder %s18, 0
      %p60 = por %p58, %p59
      %p61 = scmp.ne.s32.totalorder %s49, %s50
      %p62 = scmp.eq.s32.totalorder %s19, 2
      %p63 = por %p61, %p62
      %p65 = scmp.ne.s32.totalorder %s50, %s64
      %p66 = scmp.eq.s32.totalorder %s19, 0
      %p67 = por %p65, %p66
      %s69 = sadd.s32 %s68, 1
      %p72 = scmp.eq.s32.totalorder %s13, 2
      %p73 = scmp.ne.s32.totalorder %s68, %s70
      %p74 = scmp.eq.s32.totalorder %s13, 0
      %p75 = por %p73, %p74
      %p76 = scmp.ne.s32.totalorder %s68, %s70
      %p77 = scmp.eq.s32.totalorder %s18, 2
      %p78 = por %p76, %p77
      %p79 = scmp.ne.s32.totalorder %s70, %s71
      %p80 = scmp.eq.s32.totalorder %s18, 0
      %p81 = por %p79, %p80
      %p82 = scmp.ne.s32.totalorder %s70, %s71
      %p83 = scmp.eq.s32.totalorder %s19, 2
      %p84 = por %p82, %p83
      %p86 = scmp.ne.s32.totalorder %s71, %s85
      %p87 = scmp.eq.s32.totalorder %s19, 0
      %p88 = por %p86, %p87
      %s90 = sadd.s32 %s89, 1
      %p93 = scmp.eq.s32.totalorder %s13, 2
      %p94 = scmp.ne.s32.totalorder %s89, %s91
      %p95 = scmp.eq.s32.totalorder %s13, 0
      %p96 = por %p94, %p95
      %p97 = scmp.ne.s32.totalorder %s89, %s91
      %p98 = scmp.eq.s32.totalorder %s18, 2
      %p99 = por %p97, %p98
      %p100 = scmp.ne.s32.totalorder %s91, %s92
      %p101 = scmp.eq.s32.totalorder %s18, 0
      %p102 = por %p100, %p101
      %p103 = scmp.ne.s32.totalorder %s91, %s92
      %p104 = scmp.eq.s32.totalorder %s19, 2
      %p105 = por %p103, %p104
      %p107 = scmp.ne.s32.totalorder %s92, %s106
      %p108 = scmp.eq.s32.totalorder %s19, 0
      %p109 = por %p107, %p108
      %s110 = ssub.s32 %s13, %s20
      %p111 = scmp.eq.s32.totalorder %s110, 0
      %s113 = sadd.s32 %s112, 1
      %s114 = scalar_select %p111, %s112, %s113
      %p117 = pneg %p111
      %p118 = scmp.eq.s32.totalorder %s13, 2
      %p119 = por %p117, %p118
      %p120 = scmp.ne.s32.totalorder %s112, %s115
      %p121 = scmp.eq.s32.totalorder %s13, 0
      %p122 = por %p120, %p121
      %p123 = scmp.ne.s32.totalorder %s112, %s115
      %p124 = scmp.eq.s32.totalorder %s18, 2
      %p125 = por %p123, %p124
      %p126 = scmp.ne.s32.totalorder %s115, %s116
      %p127 = scmp.eq.s32.totalorder %s18, 0
      %p128 = por %p126, %p127
      %p129 = scmp.ne.s32.totalorder %s115, %s116
      %p130 = scmp.eq.s32.totalorder %s19, 2
      %p131 = por %p129, %p130
      %p133 = scmp.ne.s32.totalorder %s116, %s132
      %p134 = scmp.eq.s32.totalorder %s19, 0
      %p135 = por %p133, %p134
      %p136 = scmp.le.s32.totalorder 1, %s13
      %p137 = scmp.lt.s32.totalorder %s13, 4
      %p138 = pnand %p136, %p137
      %p139 = pneg %p138
      // Predicated region
      $region9: #{patch_merging3d.1} parent=5 // pred_check
        _
      $region10: #{patch_merging3d.1} parent=5 // pred_check_branch
        %141 = sbr.rel (%p138) target = $region12
      $region11: #{patch_merging3d.1} parent=5 // pred_region
        %s142 = ssub.s32 %s13, 1
        // Predicated region
        $region13: #{patch_merging3d.1} parent=11 // pred_check
          %p143 = pneg %p60
        $region14: #{patch_merging3d.1} parent=11 // pred_check_branch
          %145 = sbr.rel (%p143) target = $region16
        $region15: #{patch_merging3d.1} parent=11 // pred_region
          _
        $region16: #{patch_merging3d.1} parent=11 // pred_fallthru
          _
        // Predicated region
        $region17: #{patch_merging3d.1} parent=11 // pred_check
          %p146 = pneg %p81
        $region18: #{patch_merging3d.1} parent=11 // pred_check_branch
          %148 = sbr.rel (%p146) target = $region20
        $region19: #{patch_merging3d.1} parent=11 // pred_region
          _
        $region20: #{patch_merging3d.1} parent=11 // pred_fallthru
          _
        // Predicated region
        $region21: #{patch_merging3d.1} parent=11 // pred_check
          %p149 = pneg %p102
        $region22: #{patch_merging3d.1} parent=11 // pred_check_branch
          %151 = sbr.rel (%p149) target = $region24
        $region23: #{patch_merging3d.1} parent=11 // pred_region
          _
        $region24: #{patch_merging3d.1} parent=11 // pred_fallthru
          _
      $region12: #{patch_merging3d.1} parent=5 // pred_fallthru
        _
      %p152 = scmp.lt.s32.totalorder %s13, 3
      // Predicated region
      $region25: #{patch_merging3d.1} parent=5 // pred_check
        %p153 = pneg %p152
      $region26: #{patch_merging3d.1} parent=5 // pred_check_branch
        %155 = sbr.rel (%p153) target = $region28
      $region27: #{patch_merging3d.1} parent=5 // pred_region
        // Predicated region
        $region29: #{patch_merging3d.1} parent=27 // pred_check
          %p156 = pneg %p33
        $region30: #{patch_merging3d.1} parent=27 // pred_check_branch
          %158 = sbr.rel (%p156) target = $region32
        $region31: #{patch_merging3d.1} parent=27 // pred_region
          %s159 = smul.u32 4, %s13
          %s160 = ssub.s32 10, %s159
          %p161 = scmp.lt.s32.totalorder %s160, 4
          %s162 = scalar_select %p161, %s160, 4
          %s163 = smul.u32 128, %s162
          %p164 = scmp.lt.s32.totalorder %s159, 9
          %s165 = scalar_select %p164, %s159, 9
          %s166 = smul.addr %s165, 8
          %s167 = scalar_lea.vmem %s0, %s166
          %s168 = smul.u32 4, %s13
          %s169 = ssub.s32 10, %s168
          %p170 = scmp.lt.s32.totalorder %s169, 4
          %s171 = scalar_select %p170, %s169, 4
          %s172 = smul.u32 128, %s171
        $region32: #{patch_merging3d.1} parent=27 // pred_fallthru
          _
      $region28: #{patch_merging3d.1} parent=5 // pred_fallthru
        _
      %p173 = scmp.le.s32.totalorder 1, %s13
      %p174 = scmp.lt.s32.totalorder %s13, 4
      %p175 = pnand %p173, %p174
      %p176 = pneg %p175
      // Predicated region
      $region33: #{patch_merging3d.1} parent=5 // pred_check
        _
      $region34: #{patch_merging3d.1} parent=5 // pred_check_branch
        %178 = sbr.rel (%p175) target = $region36
      $region35: #{patch_merging3d.1} parent=5 // pred_region
        %s179 = ssub.s32 %s13, 1
        %s180 = smul.u32 4, %s18
        %s181 = ssub.s32 10, %s180
        %p182 = scmp.lt.s32.totalorder %s181, 4
        %s183 = scalar_select %p182, %s181, 4
        %s184 = smul.u32 128, %s183
        %p185 = scmp.lt.s32.totalorder %s180, 9
        %s186 = scalar_select %p185, %s180, 9
        %s187 = smul.addr %s186, 8
        %s188 = scalar_lea.vmem %s0, %s187
        %p189 = pneg %p39
        %p190 = pneg %p36
        %p191 = pneg %p60
        %p192 = pneg %p57
        %p193 = pneg %p81
        %p194 = pneg %p78
        %p195 = pneg %p102
        %p196 = pneg %p99
        %p197 = pneg %p128
        %p198 = pneg %p125
        %s199 = sand.u32 %s115, 1
        %s200 = scalar_lea.sflag [#allocation3], %s199
        %s201 = sand.u32 %s115, 1
        %s202 = smul.addr %s201, 32
        %s203 = scalar_lea.vmem [#allocation2], %s202
        %s204 = smul.u32 4, %s18
        %s205 = ssub.s32 10, %s204
        %p206 = scmp.lt.s32.totalorder %s205, 4
        %s207 = scalar_select %p206, %s205, 4
        %s208 = smul.u32 128, %s207
        %p209 = scmp.lt.s32.totalorder %s204, 9
        %s210 = scalar_select %p209, %s204, 9
        %s211 = smul.addr %s210, 8
        %s212 = scalar_lea.vmem %s0, %s211
        %s213 = smul.u32 4, %s18
        %s214 = ssub.s32 10, %s213
        %p215 = scmp.lt.s32.totalorder %s214, 4
        %s216 = scalar_select %p215, %s214, 4
        %s217 = smul.u32 128, %s216
        %s218 = smul.u32 4, %s18
        %s219 = ssub.s32 10, %s218
        %p220 = scmp.lt.s32.totalorder %s219, 4
        %s221 = scalar_select %p220, %s219, 4
        %s222 = smul.u32 128, %s221
        %v223 = vld [vmem:[%s212] sm:$0xff]
        %v224 = vld [vmem:[%s212 + $0x8] sm:$0xff]
        %v225 = vld [vmem:[%s212 + $0x10] sm:$0xff]
        %v226 = vld [vmem:[%s212 + $0x18] sm:$0xff]
        %227 = vadd.xlane.f32.xlu0 %v223
        %v228 = vpop.xlane.xlu0 %227
        %229 = vadd.xlane.f32.xlu0 %v224
        %v230 = vpop.xlane.xlu0 %229
        %231 = vadd.xlane.f32.xlu0 %v225
        %v232 = vpop.xlane.xlu0 %231
        %233 = vadd.xlane.f32.xlu0 %v226
        %v234 = vpop.xlane.xlu0 %233
        %v235 = vmul.f32 %v223, %v223
        %v236 = vmul.f32 %v224, %v224
        %v237 = vmul.f32 %v225, %v225
        %v238 = vmul.f32 %v226, %v226
        %239 = vadd.xlane.f32.xlu0 %v235
        %v240 = vpop.xlane.xlu0 %239
        %241 = vadd.xlane.f32.xlu0 %v236
        %v242 = vpop.xlane.xlu0 %241
        %243 = vadd.xlane.f32.xlu0 %v237
        %v244 = vpop.xlane.xlu0 %243
        %245 = vadd.xlane.f32.xlu0 %v238
        %v246 = vpop.xlane.xlu0 %245
        %v247 = vmul.f32 %v228, 0.0078125
        %v248 = vmul.f32 %v230, 0.0078125
        %v249 = vmul.f32 %v232, 0.0078125
        %v250 = vmul.f32 %v234, 0.0078125
        %v251 = vmul.f32 %v240, 0.0078125
        %v252 = vmul.f32 %v242, 0.0078125
        %v253 = vmul.f32 %v244, 0.0078125
        %v254 = vmul.f32 %v246, 0.0078125
        %v255 = vmul.f32 %v247, %v247
        %v256 = vmul.f32 %v248, %v248
        %v257 = vmul.f32 %v249, %v249
        %v258 = vmul.f32 %v250, %v250
        %v259 = vsub.f32 %v251, %v255
        %v260 = vsub.f32 %v252, %v256
        %v261 = vsub.f32 %v253, %v257
        %v262 = vsub.f32 %v254, %v258
        %v263 = vadd.f32 %v259, 1e-05
        %v264 = vadd.f32 %v260, 1e-05
        %v265 = vadd.f32 %v261, 1e-05
        %v266 = vadd.f32 %v262, 1e-05
        %v267 = vrsqrt.pop %v263
        %v268 = vrsqrt.pop %v264
        %v269 = vrsqrt.pop %v265
        %v270 = vrsqrt.pop %v266
        %v271 = vld [vmem:[%s1] sm:$0xff]
        %v272 = vld [vmem:[%s1 + $0x8] sm:$0xff]
        %v273 = vld [vmem:[%s1 + $0x10] sm:$0xff]
        %v274 = vld [vmem:[%s1 + $0x18] sm:$0xff]
        %v275 = vld [vmem:[%s1 + $0x20] sm:$0xff]
        %v276 = vld [vmem:[%s1 + $0x28] sm:$0xff]
        %v277 = vld [vmem:[%s1 + $0x30] sm:$0xff]
        %v278 = vld [vmem:[%s1 + $0x38] sm:$0xff]
        %v279 = vld [vmem:[%s1 + $0x40] sm:$0xff]
        %v280 = vld [vmem:[%s1 + $0x48] sm:$0xff]
        %v281 = vld [vmem:[%s1 + $0x50] sm:$0xff]
        %v282 = vld [vmem:[%s1 + $0x58] sm:$0xff]
        %v283 = vld [vmem:[%s1 + $0x60] sm:$0xff]
        %v284 = vld [vmem:[%s1 + $0x68] sm:$0xff]
        %v285 = vld [vmem:[%s1 + $0x70] sm:$0xff]
        %v286 = vld [vmem:[%s1 + $0x78] sm:$0xff]
        %287 = vmatprep.subr.mxu0 0.0
        %288 = vmatpush1.msra.mxu0 %v271
        %289 = vmatprep.subr.mxu0 0.0
        %290 = vmatpush1.msra.mxu0 %v272
        %291 = vmatprep.subr.mxu0 0.0
        %292 = vmatpush1.msra.mxu0 %v273
        %293 = vmatprep.subr.mxu0 0.0
        %294 = vmatpush1.msra.mxu0 %v274
        %295 = vmatprep.subr.mxu0 0.0
        %296 = vmatpush1.msra.mxu0 %v275
        %297 = vmatprep.subr.mxu0 0.0
        %298 = vmatpush1.msra.mxu0 %v276
        %299 = vmatprep.subr.mxu0 0.0
        %300 = vmatpush1.msra.mxu0 %v277
        %301 = vmatprep.subr.mxu0 0.0
        %302 = vmatpush1.msra.mxu0 %v278
        %303 = vmatprep.subr.mxu0 0.0
        %304 = vmatpush1.msra.mxu0 %v279
        %305 = vmatprep.subr.mxu0 0.0
        %306 = vmatpush1.msra.mxu0 %v280
        %307 = vmatprep.subr.mxu0 0.0
        %308 = vmatpush1.msra.mxu0 %v281
        %309 = vmatprep.subr.mxu0 0.0
        %310 = vmatpush1.msra.mxu0 %v282
        %311 = vmatprep.subr.mxu0 0.0
        %312 = vmatpush1.msra.mxu0 %v283
        %313 = vmatprep.subr.mxu0 0.0
        %314 = vmatpush1.msra.mxu0 %v284
        %315 = vmatprep.subr.mxu0 0.0
        %316 = vmatpush1.msra.mxu0 %v285
        %317 = vmatprep.subr.mxu0 0.0
        %318 = vmatpush1.msra.mxu0 %v286
        %319 = vmatprep.subr.mxu0 0.0
        %320 = vmatpush1.msra.mxu0 0.0
        %321 = vmatprep.subr.mxu0 0.0
        %322 = vmatpush1.msra.mxu0 0.0
        %323 = vmatprep.subr.mxu0 0.0
        %324 = vmatpush1.msra.mxu0 0.0
        %325 = vmatprep.subr.mxu0 0.0
        %326 = vmatpush1.msra.mxu0 0.0
        %327 = vmatprep.subr.mxu0 0.0
        %328 = vmatpush1.msra.mxu0 0.0
        %329 = vmatprep.subr.mxu0 0.0
        %330 = vmatpush1.msra.mxu0 0.0
        %331 = vmatprep.subr.mxu0 0.0
        %332 = vmatpush1.msra.mxu0 0.0
        %333 = vmatprep.subr.mxu0 0.0
        %334 = vmatpush1.msra.mxu0 0.0
        %335 = vmatprep.subr.mxu0 0.0
        %336 = vmatpush1.msra.mxu0 0.0
        %337 = vmatprep.subr.mxu0 0.0
        %338 = vmatpush1.msra.mxu0 0.0
        %339 = vmatprep.subr.mxu0 0.0
        %340 = vmatpush1.msra.mxu0 0.0
        %341 = vmatprep.subr.mxu0 0.0
        %342 = vmatpush1.msra.mxu0 0.0
        %343 = vmatprep.subr.mxu0 0.0
        %344 = vmatpush1.msra.mxu0 0.0
        %345 = vmatprep.subr.mxu0 0.0
        %346 = vmatpush1.msra.mxu0 0.0
        %347 = vmatprep.subr.mxu0 0.0
        %348 = vmatpush1.msra.mxu0 0.0
        %349 = vmatprep.subr.mxu0 0.0
        %350 = vmatpush1.msra.mxu0 0.0
        %351 = vmatprep.mubr.f32.mxu0 0.0
        %352 = vmatmul.mubr.f32.gmra.mrb[0].mxu0 %v223
        %v353 = vpop.f32.mrb[0].mxu0
        %v354 = vadd.f32 0.0, %v353
        %v355 = vpop.f32.mrb[0].mxu0
        %356 = vmatprep.mubr.f32.mxu0 0.0
        %357 = vmatmul.mubr.f32.gmra.mrb[0].mxu0 %v224
        %v358 = vpop.f32.mrb[0].mxu0
        %v359 = vadd.f32 0.0, %v358
        %v360 = vpop.f32.mrb[0].mxu0
        %361 = vmatprep.mubr.f32.mxu0 0.0
        %362 = vmatmul.mubr.f32.gmra.mrb[0].mxu0 %v225
        %v363 = vpop.f32.mrb[0].mxu0
        %v364 = vadd.f32 0.0, %v363
        %v365 = vpop.f32.mrb[0].mxu0
        %366 = vmatprep.mubr.f32.mxu0 0.0
        %367 = vmatmul.mubr.f32.gmra.mrb[0].mxu0 %v226
        %v368 = vpop.f32.mrb[0].mxu0
        %v369 = vadd.f32 0.0, %v368
        %v370 = vpop.f32.mrb[0].mxu0
        %371 = vdwg.mxu0
        %v372 = vld [vmem:[%s2] sm:$0x1]
        %v373 = vld [vmem:[%s3] sm:$0x1]
        %v375 = vlaneseq
        %v376 = vshrl.u32 %v375, 7
        %v377 = vsub.s32 0, %v376
        %v378 = vrot.slane %v372, %v377
        %v380 = vmul.f32 %v247, %v378
        %v381 = vmul.f32 %v248, %v378
        %v382 = vmul.f32 %v249, %v378
        %v383 = vmul.f32 %v250, %v378
        %v384 = vsub.f32 %v354, %v380
        %v385 = vsub.f32 %v359, %v381
        %v386 = vsub.f32 %v364, %v382
        %v387 = vsub.f32 %v369, %v383
        %v388 = vmul.f32 %v267, %v384
        %v389 = vmul.f32 %v268, %v385
        %v390 = vmul.f32 %v269, %v386
        %v391 = vmul.f32 %v270, %v387
        %v393 = vlaneseq
        %v394 = vshrl.u32 %v393, 7
        %v395 = vsub.s32 0, %v394
        %v396 = vrot.slane %v373, %v395
        %v398 = vadd.f32 %v388, %v396
        %v399 = vadd.f32 %v389, %v396
        %v400 = vadd.f32 %v390, %v396
        %v401 = vadd.f32 %v391, %v396
        %vm402 = vcmask 523264
        %403 = vst.msk [vmem:[%s203] sm:$0xff] %vm402, %v398
        %404 = vst.msk [vmem:[%s203 + $0x8] sm:$0xff] %vm402, %v399
        %405 = vst.msk [vmem:[%s203 + $0x10] sm:$0xff] %vm402, %v400
        %406 = vst.msk [vmem:[%s203 + $0x18] sm:$0xff] %vm402, %v401
        %s407 = sand.u32 %s115, 1
        %s408 = scalar_lea.sflag [#allocation3], %s407
        %s409 = sand.u32 %s115, 1
        %s410 = smul.addr %s409, 32
        %s411 = scalar_lea.vmem [#allocation2], %s410
        // Predicated region
        $region37: #{patch_merging3d.1} parent=35 // pred_check
          %p412 = pneg %p125
        $region38: #{patch_merging3d.1} parent=35 // pred_check_branch
          %414 = sbr.rel (%p412) target = $region40
        $region39: #{patch_merging3d.1} parent=35 // pred_region
          %s415 = smul.u32 4, %s18
          %s416 = ssub.s32 10, %s415
          %p417 = scmp.lt.s32.totalorder %s416, 4
          %s418 = scalar_select %p417, %s416, 4
          %s419 = smul.u32 128, %s418
          %s421 = ssub.s32 512, %s419
          %422 = vsyncadd %s408, %s421
          %p423 = scmp.ne.s32.totalorder 0, %s419
          %s424 = smul.addr %s415, 128
          %s425 = scalar_lea.hbm %s4, %s424
          %s426 = smul.u32 8, %s418
          %s427 = sshll.u32 %s411, 4
          %s428 = int_to_ptr.vmem [resolvable:$true] %s427
          %s429 = sshll.u32 %s426, 4
          %433 = dma.vmem_to_hbm [thread:$0]  (%p423), %s428, %s429, %s425, %s408, 128, 128, 8
        $region40: #{patch_merging3d.1} parent=35 // pred_fallthru
          _
      $region36: #{patch_merging3d.1} parent=5 // pred_fallthru
        _
      %p434 = scmp.le.s32.totalorder 2, %s13
      // Predicated region
      $region41: #{patch_merging3d.1} parent=5 // pred_check
        %p435 = pneg %p434
      $region42: #{patch_merging3d.1} parent=5 // pred_check_branch
        %437 = sbr.rel (%p435) target = $region44
      $region43: #{patch_merging3d.1} parent=5 // pred_region
        %s438 = ssub.s32 %s13, 2
        // Predicated region
        $region45: #{patch_merging3d.1} parent=43 // pred_check
          %p439 = pneg %p131
        $region46: #{patch_merging3d.1} parent=43 // pred_check_branch
          %441 = sbr.rel (%p439) target = $region48
        $region47: #{patch_merging3d.1} parent=43 // pred_region
          %s442 = sand.u32 %s116, 1
          %s443 = scalar_lea.sflag [#allocation3], %s442
          %s444 = sand.u32 %s116, 1
          %s445 = smul.addr %s444, 32
          %s446 = scalar_lea.vmem [#allocation2], %s445
          %447 = dma.done %s443, 512
        $region48: #{patch_merging3d.1} parent=43 // pred_fallthru
          _
      $region44: #{patch_merging3d.1} parent=5 // pred_fallthru
        _
    $region6: #{patch_merging3d.1} parent=1 // loop_footer
      %s17 = sadd.s32 1, %s13
    $region7: #{patch_merging3d.1} parent=1 // loop_footer_branch
      %12 = sbr.rel target = $region3
    $region8: #{patch_merging3d.1} parent=1 // loop_exit
      _
    %448 = vsyncpa [#allocation3], 1
    %s449 = scalar_lea.sflag [#allocation3], 1
    %450 = vsyncpa %s449, 1

</llo_original>
